<compile_context>
chip_gen: v7x
topology: tpu7x:2x2x1
jax: 0.10.0
libtpu: 0.0.40
codegen_flags: <defaults>
</compile_context>

<pallas_src>
import functools

import jax
import jax.numpy as jnp
from jax.experimental import pallas as pl
from jax.experimental.pallas import tpu as pltpu


def _int_pow(x, n):
    """x**n for small non-negative integer n via repeated multiplies (VPU only)."""
    n = int(n)
    if n == 0:
        return jnp.ones_like(x)
    result = None
    base = x
    while n:
        if n & 1:
            result = base if result is None else result * base
        n >>= 1
        if n:
            base = base * base
    return result


def _focal_kernel(*refs, alpha, beta, n_rows, block_rows, has_mask, need_row_mask):
    """One (TR, W) row-tile of the flattened heatmaps.

    Writes this block's partial sums to its own output row:
      out_ref[0, 0] = sum(pos_loss)   out_ref[0, 1] = sum(neg_loss)
      out_ref[0, 2] = num_pos
    """
    if has_mask:
        pred_ref, gt_ref, mask_ref, out_ref = refs
    else:
        pred_ref, gt_ref, out_ref = refs
        mask_ref = None

    pred = pred_ref[...].astype(jnp.float32)
    gt = gt_ref[...].astype(jnp.float32)

    # Exact reference semantics: pos = (gt == 1), neg = (gt < 1).
    pos_inds = gt == 1.0
    neg_inds = gt < 1.0

    if has_mask:
        mask_bool = mask_ref[...] != 0
        pos_inds = pos_inds & mask_bool
        neg_inds = neg_inds & mask_bool

    if need_row_mask:
        # Last grid block may read past the real rows (unspecified values);
        # exclude those rows from both index sets.
        row0 = pl.program_id(0) * block_rows
        rows = jax.lax.broadcasted_iota(jnp.int32, pred.shape, 0) + row0
        valid = rows < n_rows
        pos_inds = pos_inds & valid
        neg_inds = neg_inds & valid

    one_m_pred = 1.0 - pred
    pow_1mp_a = _int_pow(one_m_pred, alpha)     # (1 - pred)^alpha
    pow_p_a = _int_pow(pred, alpha)             # pred^alpha
    neg_w = _int_pow(1.0 - gt, beta)            # (1 - gt)^beta

    # Keep jnp.where (not a multiply by a 0/1 mask) so any -inf/NaN produced
    # by log() at excluded / padded positions is discarded, matching
    # torch.where in the reference.
    pos_loss = jnp.where(pos_inds, jnp.log(pred) * pow_1mp_a, 0.0)
    neg_loss = jnp.where(neg_inds, jnp.log(one_m_pred) * pow_p_a * neg_w, 0.0)

    out_ref[0, 0] = jnp.sum(pos_loss)
    out_ref[0, 1] = jnp.sum(neg_loss)
    out_ref[0, 2] = jnp.sum(pos_inds.astype(jnp.float32))


def _choose_row_tile(n_rows, width, target_bytes=1 << 20):
    """Largest multiple-of-8 row tile whose f32 working set is ~target_bytes."""
    if n_rows <= 8:
        return int(n_rows)                      # full extent (allowed)
    bytes_per_row = max(int(width), 1) * 4      # size intermediates as f32
    tr = max((target_bytes // bytes_per_row) // 8 * 8, 8)
    if tr >= n_rows:
        if n_rows % 8 == 0:
            return int(n_rows)
        tr = max((n_rows // 8) * 8, 8)
    return int(tr)


def focal_heatmap_loss(pred, gt, mask=None, alpha=2, beta=4):
    """Pallas implementation of FocalHeatmapLoss_old.forward -> scalar f32 loss."""
    assert pred.shape == gt.shape and pred.ndim == 4
    B, C, H, W = pred.shape
    R = B * C * H

    # Free row-major flatten to lane-dense 2-D views; keep native dtype on the
    # wire (bf16 halves HBM traffic), cast to f32 inside the kernel.
    p2 = pred.reshape(R, W)
    g2 = gt.reshape(R, W)
    inputs = [p2, g2]

    has_mask = mask is not None
    if has_mask:
        m2 = jnp.broadcast_to(mask, pred.shape).reshape(R, W)
        if m2.dtype == jnp.bool_:
            m2 = m2.astype(jnp.int32)
        inputs.append(m2)

    TR = _choose_row_tile(R, W)
    nb = (R + TR - 1) // TR
    need_row_mask = (R % TR) != 0

    kernel = functools.partial(
        _focal_kernel, alpha=int(alpha), beta=int(beta), n_rows=R,
        block_rows=TR, has_mask=has_mask, need_row_mask=need_row_mask)

    in_specs = [pl.BlockSpec((TR, W), lambda i: (i, 0)) for _ in inputs]
    out_spec = pl.BlockSpec((1, 3), lambda i: (i, 0),
                            memory_space=pltpu.MemorySpace.SMEM)

    partials = pl.pallas_call(
        kernel,
        out_shape=jax.ShapeDtypeStruct((nb, 3), jnp.float32),
        grid_spec=pltpu.PrefetchScalarGridSpec(
            num_scalar_prefetch=0,
            grid=(nb,),
            in_specs=in_specs,
            out_specs=out_spec,
        ),
        compiler_params=pltpu.CompilerParams(
            dimension_semantics=("parallel",)),
    )(*inputs)

    pos_sum = jnp.sum(partials[:, 0])
    neg_sum = jnp.sum(partials[:, 1])
    num_pos = jnp.sum(partials[:, 2])

    # if num_pos == 0: loss = -neg_sum  else: -(pos_sum + neg_sum) / num_pos
    safe_den = jnp.where(num_pos == 0, 1.0, num_pos)
    return jnp.where(num_pos == 0,
                     0.0 - neg_sum,
                     0.0 - (pos_sum + neg_sum) / safe_den)


def _reference_loss(pred, gt, mask=None, alpha=2, beta=4):
    """Pure-JAX reference mirroring the PyTorch forward."""
    pos_inds = gt == 1.0
    neg_inds = gt < 1.0
    if mask is not None:
        mask_bool = jnp.broadcast_to(mask, gt.shape) != 0
        pos_inds = pos_inds & mask_bool
        neg_inds = neg_inds & mask_bool
    neg_weights = jnp.power(1.0 - gt, beta)
    pos_loss = jnp.where(pos_inds, jnp.log(pred) * jnp.power(1.0 - pred, alpha), 0.0)
    neg_loss = jnp.where(
        neg_inds, jnp.log(1.0 - pred) * jnp.power(pred, alpha) * neg_weights, 0.0)
    num_pos = jnp.sum(pos_inds.astype(jnp.float32))
    pos_sum = jnp.sum(pos_loss)
    neg_sum = jnp.sum(neg_loss)
    safe_den = jnp.where(num_pos == 0, 1.0, num_pos)
    return jnp.where(num_pos == 0, -neg_sum, -(pos_sum + neg_sum) / safe_den)


if __name__ == "__main__":
    key = jax.random.PRNGKey(0)
    B, C, H, W = 2, 4, 16, 16
    k1, k2, k3, k4 = jax.random.split(key, 4)

    # pred: sigmoid-like probabilities, kept away from exact 0/1 for log().
    pred = jax.nn.sigmoid(jax.random.normal(k1, (B, C, H, W), dtype=jnp.float32))
    pred = jnp.clip(pred, 1e-4, 1.0 - 1e-4)

    # gt: gaussian-ish heatmap values in [0,1) with a few exact-1 peaks.
    gt = jax.random.uniform(k2, (B, C, H, W), dtype=jnp.float32, maxval=0.99)
    peaks = jax.random.uniform(k3, (B, C, H, W)) > 0.97
    gt = jnp.where(peaks, 1.0, gt)

    # 1) default call (mask=None): 2-input kernel, no synthetic mask traffic.
    loss = jax.block_until_ready(focal_heatmap_loss(pred, gt))
    ref = _reference_loss(pred, gt)
    assert jnp.allclose(loss, ref, rtol=1e-5, atol=1e-5), (loss, ref)

    # 2) explicit mask: 3-input kernel variant.
    msk = (jax.random.uniform(k4, (B, C, H, W)) > 0.3).astype(jnp.float32)
    loss_m = jax.block_until_ready(focal_heatmap_loss(pred, gt, mask=msk))
    ref_m = _reference_loss(pred, gt, mask=msk)
    assert jnp.allclose(loss_m, ref_m, rtol=1e-5, atol=1e-5), (loss_m, ref_m)

    # 3) ragged row count (B*C*H not a multiple of the row tile) to exercise
    #    the in-kernel row-validity masking of the padded last block.
    B2, C2, H2, W2 = 1, 3, 7, 20
    p2 = jnp.clip(jax.nn.sigmoid(
        jax.random.normal(k1, (B2, C2, H2, W2), dtype=jnp.float32)),
        1e-4, 1.0 - 1e-4)
    g2 = jax.random.uniform(k2, (B2, C2, H2, W2), dtype=jnp.float32, maxval=0.99)
    g2 = jnp.where(jax.random.uniform(k3, (B2, C2, H2, W2)) > 0.9, 1.0, g2)
    loss2 = jax.block_until_ready(focal_heatmap_loss(p2, g2))
    ref2 = _reference_loss(p2, g2)
    assert jnp.allclose(loss2, ref2, rtol=1e-5, atol=1e-5), (loss2, ref2)

    print("KERNEL_OK")
</pallas_src>

<mosaic_0001>
module attributes {stable_mosaic.version = 11 : i64} {
  func.func @_focal_kernel(%arg0: i32, %arg1: memref<128x16xf32, #tpu.memory_space<vmem>>, %arg2: memref<128x16xf32, #tpu.memory_space<vmem>>, %arg3: memref<1x3xf32, #tpu.memory_space<smem>>) attributes {dimension_semantics = [#tpu.dimension_semantics<parallel>], iteration_bounds = array<i64: 1>, scalar_prefetch = 0 : i64, scratch_operands = 0 : i64, tpu.core_type = #tpu.core_type<tc>, window_params = [{transform_indices = @transform_0, window_bounds = array<i64: 128, 16>}, {transform_indices = @transform_1, window_bounds = array<i64: 128, 16>}, {transform_indices = @transform_2, window_bounds = array<i64: 1, 3>}]} {
    %c0 = arith.constant 0 : index
    %c0_0 = arith.constant 0 : index
    %0 = vector.load %arg1[%c0, %c0_0] : memref<128x16xf32, #tpu.memory_space<vmem>>, vector<128x16xf32>
    %c0_1 = arith.constant 0 : index
    %c0_2 = arith.constant 0 : index
    %1 = vector.load %arg2[%c0_1, %c0_2] : memref<128x16xf32, #tpu.memory_space<vmem>>, vector<128x16xf32>
    %cst = arith.constant 1.000000e+00 : f32
    %2 = vector.broadcast %cst : f32 to vector<128x16xf32>
    %3 = arith.cmpf oeq, %1, %2 : vector<128x16xf32>
    %cst_3 = arith.constant 1.000000e+00 : f32
    %4 = vector.broadcast %cst_3 : f32 to vector<128x16xf32>
    %5 = arith.cmpf olt, %1, %4 : vector<128x16xf32>
    %cst_4 = arith.constant 1.000000e+00 : f32
    %6 = vector.broadcast %cst_4 : f32 to vector<128x16xf32>
    %7 = arith.subf %6, %0 : vector<128x16xf32>
    %8 = arith.mulf %7, %7 : vector<128x16xf32>
    %9 = arith.mulf %0, %0 : vector<128x16xf32>
    %cst_5 = arith.constant 1.000000e+00 : f32
    %10 = vector.broadcast %cst_5 : f32 to vector<128x16xf32>
    %11 = arith.subf %10, %1 : vector<128x16xf32>
    %12 = arith.mulf %11, %11 : vector<128x16xf32>
    %13 = arith.mulf %12, %12 : vector<128x16xf32>
    %14 = math.log %0 : vector<128x16xf32>
    %15 = arith.mulf %14, %8 : vector<128x16xf32>
    %cst_6 = arith.constant 0.000000e+00 : f32
    %16 = vector.broadcast %cst_6 : f32 to vector<128x16xf32>
    %17 = arith.select %3, %15, %16 : vector<128x16xi1>, vector<128x16xf32>
    %18 = math.log %7 : vector<128x16xf32>
    %19 = arith.mulf %18, %9 : vector<128x16xf32>
    %20 = arith.mulf %19, %13 : vector<128x16xf32>
    %cst_7 = arith.constant 0.000000e+00 : f32
    %21 = vector.broadcast %cst_7 : f32 to vector<128x16xf32>
    %22 = arith.select %5, %20, %21 : vector<128x16xi1>, vector<128x16xf32>
    %23 = vector.shape_cast %17 : vector<128x16xf32> to vector<1x128x16xf32>
    %cst_8 = arith.constant dense<0.000000e+00> : vector<1xf32>
    %24 = vector.multi_reduction <add>, %23, %cst_8 [1, 2] : vector<1x128x16xf32> to vector<1xf32>
    %25 = vector.shape_cast %24 : vector<1xf32> to vector<1x1x1xf32>
    %26 = vector.extract %25[0, 0, 0] : f32 from vector<1x1x1xf32>
    %c0_9 = arith.constant 0 : index
    %c0_10 = arith.constant 0 : index
    %27 = memref.load %arg3[%c0_9, %c0_10] : memref<1x3xf32, #tpu.memory_space<smem>>
    memref.store %26, %arg3[%c0_9, %c0_10] : memref<1x3xf32, #tpu.memory_space<smem>>
    %28 = vector.shape_cast %22 : vector<128x16xf32> to vector<1x128x16xf32>
    %cst_11 = arith.constant dense<0.000000e+00> : vector<1xf32>
    %29 = vector.multi_reduction <add>, %28, %cst_11 [1, 2] : vector<1x128x16xf32> to vector<1xf32>
    %30 = vector.shape_cast %29 : vector<1xf32> to vector<1x1x1xf32>
    %31 = vector.extract %30[0, 0, 0] : f32 from vector<1x1x1xf32>
    %c0_12 = arith.constant 0 : index
    %c1 = arith.constant 1 : index
    %32 = memref.load %arg3[%c0_12, %c1] : memref<1x3xf32, #tpu.memory_space<smem>>
    memref.store %31, %arg3[%c0_12, %c1] : memref<1x3xf32, #tpu.memory_space<smem>>
    %33 = arith.extui %3 : vector<128x16xi1> to vector<128x16xi32>
    %34 = arith.sitofp %33 : vector<128x16xi32> to vector<128x16xf32>
    %35 = vector.shape_cast %34 : vector<128x16xf32> to vector<1x128x16xf32>
    %cst_13 = arith.constant dense<0.000000e+00> : vector<1xf32>
    %36 = vector.multi_reduction <add>, %35, %cst_13 [1, 2] : vector<1x128x16xf32> to vector<1xf32>
    %37 = vector.shape_cast %36 : vector<1xf32> to vector<1x1x1xf32>
    %38 = vector.extract %37[0, 0, 0] : f32 from vector<1x1x1xf32>
    %c0_14 = arith.constant 0 : index
    %c2 = arith.constant 2 : index
    %39 = memref.load %arg3[%c0_14, %c2] : memref<1x3xf32, #tpu.memory_space<smem>>
    memref.store %38, %arg3[%c0_14, %c2] : memref<1x3xf32, #tpu.memory_space<smem>>
    return
  }
  func.func @transform_0(%arg0: i32) -> (i32, i32) {
    %c0_i32 = arith.constant 0 : i32
    %c0_i32_0 = arith.constant 0 : i32
    return %arg0, %c0_i32 : i32, i32
  }
  func.func @transform_1(%arg0: i32) -> (i32, i32) {
    %c0_i32 = arith.constant 0 : i32
    %c0_i32_0 = arith.constant 0 : i32
    return %arg0, %c0_i32 : i32, i32
  }
  func.func @transform_2(%arg0: i32) -> (i32, i32) {
    %c0_i32 = arith.constant 0 : i32
    %c0_i32_0 = arith.constant 0 : i32
    return %arg0, %c0_i32 : i32, i32
  }
}

</mosaic_0001>

<llo_original>
// kernel: tpu_custom_call.1
$region0: #{tpu_custom_call.1}
  #allocation0 [shape = 'u32[]', space=smem, size = 0x4, offset = 0x4, fixed_abs, tag = 'smem constant byte address 0x4 - core index']
  #allocation1 [shape = 'u32[144,128]{1,0:T(1,128)}', space=vmem, size = 0x12000, scoped, tag = 'internal scratch']
  %s0 = inlined_call_operand.vmem [shape: f32[128,16], index: 0, kind: input, shape index: {}]
  %s1 = inlined_call_operand.vmem [shape: f32[128,16], index: 1, kind: input, shape index: {}]
  %s2 = inlined_call_operand.hbm [shape: f32[1,3], index: 2, kind: output, shape index: {}]
  %s3 = sld [smem:[#allocation0]]
  $region18: #{tpu_custom_call.1} parent=0
    _
  %s5 = ssub.s32 1, %s3
  %s6 = scalar_select 0, %s5, %s3
  $region1: #{tpu_custom_call.1} parent=0
    #allocation2 [shape = 'u8[512]{0}', space=smem, size = 0x200, scoped, tag = 'output window, operand 0, single buffered']
    #allocation3 [shape = 's32[1]{0}', space=sflag, size = 0x4, scoped, tag = 'scoped memory for tpu_custom_call.1']
    %7 = vsyncpa [#allocation3], 0
    // Predicated region
    $region2: #{tpu_custom_call.1} parent=1 // pred_check
      _
    $region3: #{tpu_custom_call.1} parent=1 // pred_check_branch
      %9 = sbr.rel (0) target = $region5
    $region4: #{tpu_custom_call.1} parent=1 // pred_region
      _
    $region5: #{tpu_custom_call.1} parent=1 // pred_fallthru
      _
    // Predicated region
    $region6: #{tpu_custom_call.1} parent=1 // pred_check
      _
    $region7: #{tpu_custom_call.1} parent=1 // pred_check_branch
      %11 = sbr.rel (0) target = $region9
    $region8: #{tpu_custom_call.1} parent=1 // pred_region
      _
    $region9: #{tpu_custom_call.1} parent=1 // pred_fallthru
      _
    %v12 = vld [vmem:[%s0] sm:$0xff]
    %v13 = vld [vmem:[%s0 + $0x8] sm:$0xff]
    %v14 = vld [vmem:[%s0 + $0x10] sm:$0xff]
    %v15 = vld [vmem:[%s0 + $0x18] sm:$0xff]
    %v16 = vld [vmem:[%s0 + $0x20] sm:$0xff]
    %v17 = vld [vmem:[%s0 + $0x28] sm:$0xff]
    %v18 = vld [vmem:[%s0 + $0x30] sm:$0xff]
    %v19 = vld [vmem:[%s0 + $0x38] sm:$0xff]
    %v20 = vld [vmem:[%s0 + $0x40] sm:$0xff]
    %v21 = vld [vmem:[%s0 + $0x48] sm:$0xff]
    %v22 = vld [vmem:[%s0 + $0x50] sm:$0xff]
    %v23 = vld [vmem:[%s0 + $0x58] sm:$0xff]
    %v24 = vld [vmem:[%s0 + $0x60] sm:$0xff]
    %v25 = vld [vmem:[%s0 + $0x68] sm:$0xff]
    %v26 = vld [vmem:[%s0 + $0x70] sm:$0xff]
    %v27 = vld [vmem:[%s0 + $0x78] sm:$0xff]
    %v28 = vld [vmem:[%s1] sm:$0xff]
    %v29 = vld [vmem:[%s1 + $0x8] sm:$0xff]
    %v30 = vld [vmem:[%s1 + $0x10] sm:$0xff]
    %v31 = vld [vmem:[%s1 + $0x18] sm:$0xff]
    %v32 = vld [vmem:[%s1 + $0x20] sm:$0xff]
    %v33 = vld [vmem:[%s1 + $0x28] sm:$0xff]
    %v34 = vld [vmem:[%s1 + $0x30] sm:$0xff]
    %v35 = vld [vmem:[%s1 + $0x38] sm:$0xff]
    %v36 = vld [vmem:[%s1 + $0x40] sm:$0xff]
    %v37 = vld [vmem:[%s1 + $0x48] sm:$0xff]
    %v38 = vld [vmem:[%s1 + $0x50] sm:$0xff]
    %v39 = vld [vmem:[%s1 + $0x58] sm:$0xff]
    %v40 = vld [vmem:[%s1 + $0x60] sm:$0xff]
    %v41 = vld [vmem:[%s1 + $0x68] sm:$0xff]
    %v42 = vld [vmem:[%s1 + $0x70] sm:$0xff]
    %v43 = vld [vmem:[%s1 + $0x78] sm:$0xff]
    %vm44 = vcmp.eq.f32.partialorder %v28, 1.0
    %vm45 = vcmp.eq.f32.partialorder %v29, 1.0
    %vm46 = vcmp.eq.f32.partialorder %v30, 1.0
    %vm47 = vcmp.eq.f32.partialorder %v31, 1.0
    %vm48 = vcmp.eq.f32.partialorder %v32, 1.0
    %vm49 = vcmp.eq.f32.partialorder %v33, 1.0
    %vm50 = vcmp.eq.f32.partialorder %v34, 1.0
    %vm51 = vcmp.eq.f32.partialorder %v35, 1.0
    %vm52 = vcmp.eq.f32.partialorder %v36, 1.0
    %vm53 = vcmp.eq.f32.partialorder %v37, 1.0
    %vm54 = vcmp.eq.f32.partialorder %v38, 1.0
    %vm55 = vcmp.eq.f32.partialorder %v39, 1.0
    %vm56 = vcmp.eq.f32.partialorder %v40, 1.0
    %vm57 = vcmp.eq.f32.partialorder %v41, 1.0
    %vm58 = vcmp.eq.f32.partialorder %v42, 1.0
    %vm59 = vcmp.eq.f32.partialorder %v43, 1.0
    %vm60 = vcmp.lt.f32.partialorder %v28, 1.0
    %vm61 = vcmp.lt.f32.partialorder %v29, 1.0
    %vm62 = vcmp.lt.f32.partialorder %v30, 1.0
    %vm63 = vcmp.lt.f32.partialorder %v31, 1.0
    %vm64 = vcmp.lt.f32.partialorder %v32, 1.0
    %vm65 = vcmp.lt.f32.partialorder %v33, 1.0
    %vm66 = vcmp.lt.f32.partialorder %v34, 1.0
    %vm67 = vcmp.lt.f32.partialorder %v35, 1.0
    %vm68 = vcmp.lt.f32.partialorder %v36, 1.0
    %vm69 = vcmp.lt.f32.partialorder %v37, 1.0
    %vm70 = vcmp.lt.f32.partialorder %v38, 1.0
    %vm71 = vcmp.lt.f32.partialorder %v39, 1.0
    %vm72 = vcmp.lt.f32.partialorder %v40, 1.0
    %vm73 = vcmp.lt.f32.partialorder %v41, 1.0
    %vm74 = vcmp.lt.f32.partialorder %v42, 1.0
    %vm75 = vcmp.lt.f32.partialorder %v43, 1.0
    %v76 = vsub.f32 1.0, %v12
    %v77 = vsub.f32 1.0, %v13
    %v78 = vsub.f32 1.0, %v14
    %v79 = vsub.f32 1.0, %v15
    %v80 = vsub.f32 1.0, %v16
    %v81 = vsub.f32 1.0, %v17
    %v82 = vsub.f32 1.0, %v18
    %v83 = vsub.f32 1.0, %v19
    %v84 = vsub.f32 1.0, %v20
    %v85 = vsub.f32 1.0, %v21
    %v86 = vsub.f32 1.0, %v22
    %v87 = vsub.f32 1.0, %v23
    %v88 = vsub.f32 1.0, %v24
    %v89 = vsub.f32 1.0, %v25
    %v90 = vsub.f32 1.0, %v26
    %v91 = vsub.f32 1.0, %v27
    %v92 = vmul.f32 %v76, %v76
    %v93 = vmul.f32 %v77, %v77
    %v94 = vmul.f32 %v78, %v78
    %v95 = vmul.f32 %v79, %v79
    %v96 = vmul.f32 %v80, %v80
    %v97 = vmul.f32 %v81, %v81
    %v98 = vmul.f32 %v82, %v82
    %v99 = vmul.f32 %v83, %v83
    %v100 = vmul.f32 %v84, %v84
    %v101 = vmul.f32 %v85, %v85
    %v102 = vmul.f32 %v86, %v86
    %v103 = vmul.f32 %v87, %v87
    %v104 = vmul.f32 %v88, %v88
    %v105 = vmul.f32 %v89, %v89
    %v106 = vmul.f32 %v90, %v90
    %v107 = vmul.f32 %v91, %v91
    %v108 = vmul.f32 %v12, %v12
    %v109 = vmul.f32 %v13, %v13
    %v110 = vmul.f32 %v14, %v14
    %v111 = vmul.f32 %v15, %v15
    %v112 = vmul.f32 %v16, %v16
    %v113 = vmul.f32 %v17, %v17
    %v114 = vmul.f32 %v18, %v18
    %v115 = vmul.f32 %v19, %v19
    %v116 = vmul.f32 %v20, %v20
    %v117 = vmul.f32 %v21, %v21
    %v118 = vmul.f32 %v22, %v22
    %v119 = vmul.f32 %v23, %v23
    %v120 = vmul.f32 %v24, %v24
    %v121 = vmul.f32 %v25, %v25
    %v122 = vmul.f32 %v26, %v26
    %v123 = vmul.f32 %v27, %v27
    %v124 = vsub.f32 1.0, %v28
    %v125 = vsub.f32 1.0, %v29
    %v126 = vsub.f32 1.0, %v30
    %v127 = vsub.f32 1.0, %v31
    %v128 = vsub.f32 1.0, %v32
    %v129 = vsub.f32 1.0, %v33
    %v130 = vsub.f32 1.0, %v34
    %v131 = vsub.f32 1.0, %v35
    %v132 = vsub.f32 1.0, %v36
    %v133 = vsub.f32 1.0, %v37
    %v134 = vsub.f32 1.0, %v38
    %v135 = vsub.f32 1.0, %v39
    %v136 = vsub.f32 1.0, %v40
    %v137 = vsub.f32 1.0, %v41
    %v138 = vsub.f32 1.0, %v42
    %v139 = vsub.f32 1.0, %v43
    %v140 = vmul.f32 %v124, %v124
    %v141 = vmul.f32 %v125, %v125
    %v142 = vmul.f32 %v126, %v126
    %v143 = vmul.f32 %v127, %v127
    %v144 = vmul.f32 %v128, %v128
    %v145 = vmul.f32 %v129, %v129
    %v146 = vmul.f32 %v130, %v130
    %v147 = vmul.f32 %v131, %v131
    %v148 = vmul.f32 %v132, %v132
    %v149 = vmul.f32 %v133, %v133
    %v150 = vmul.f32 %v134, %v134
    %v151 = vmul.f32 %v135, %v135
    %v152 = vmul.f32 %v136, %v136
    %v153 = vmul.f32 %v137, %v137
    %v154 = vmul.f32 %v138, %v138
    %v155 = vmul.f32 %v139, %v139
    %v156 = vmul.f32 %v140, %v140
    %v157 = vmul.f32 %v141, %v141
    %v158 = vmul.f32 %v142, %v142
    %v159 = vmul.f32 %v143, %v143
    %v160 = vmul.f32 %v144, %v144
    %v161 = vmul.f32 %v145, %v145
    %v162 = vmul.f32 %v146, %v146
    %v163 = vmul.f32 %v147, %v147
    %v164 = vmul.f32 %v148, %v148
    %v165 = vmul.f32 %v149, %v149
    %v166 = vmul.f32 %v150, %v150
    %v167 = vmul.f32 %v151, %v151
    %v168 = vmul.f32 %v152, %v152
    %v169 = vmul.f32 %v153, %v153
    %v170 = vmul.f32 %v154, %v154
    %v171 = vmul.f32 %v155, %v155
    %v172 = vlog2.pop %v12
    %v173 = vmul.f32 %v172, 0.6931472
    %v174 = vlog2.pop %v13
    %v175 = vmul.f32 %v174, 0.6931472
    %v176 = vlog2.pop %v14
    %v177 = vmul.f32 %v176, 0.6931472
    %v178 = vlog2.pop %v15
    %v179 = vmul.f32 %v178, 0.6931472
    %v180 = vlog2.pop %v16
    %v181 = vmul.f32 %v180, 0.6931472
    %v182 = vlog2.pop %v17
    %v183 = vmul.f32 %v182, 0.6931472
    %v184 = vlog2.pop %v18
    %v185 = vmul.f32 %v184, 0.6931472
    %v186 = vlog2.pop %v19
    %v187 = vmul.f32 %v186, 0.6931472
    %v188 = vlog2.pop %v20
    %v189 = vmul.f32 %v188, 0.6931472
    %v190 = vlog2.pop %v21
    %v191 = vmul.f32 %v190, 0.6931472
    %v192 = vlog2.pop %v22
    %v193 = vmul.f32 %v192, 0.6931472
    %v194 = vlog2.pop %v23
    %v195 = vmul.f32 %v194, 0.6931472
    %v196 = vlog2.pop %v24
    %v197 = vmul.f32 %v196, 0.6931472
    %v198 = vlog2.pop %v25
    %v199 = vmul.f32 %v198, 0.6931472
    %v200 = vlog2.pop %v26
    %v201 = vmul.f32 %v200, 0.6931472
    %v202 = vlog2.pop %v27
    %v203 = vmul.f32 %v202, 0.6931472
    %v204 = vmul.f32 %v173, %v92
    %v205 = vmul.f32 %v175, %v93
    %v206 = vmul.f32 %v177, %v94
    %v207 = vmul.f32 %v179, %v95
    %v208 = vmul.f32 %v181, %v96
    %v209 = vmul.f32 %v183, %v97
    %v210 = vmul.f32 %v185, %v98
    %v211 = vmul.f32 %v187, %v99
    %v212 = vmul.f32 %v189, %v100
    %v213 = vmul.f32 %v191, %v101
    %v214 = vmul.f32 %v193, %v102
    %v215 = vmul.f32 %v195, %v103
    %v216 = vmul.f32 %v197, %v104
    %v217 = vmul.f32 %v199, %v105
    %v218 = vmul.f32 %v201, %v106
    %v219 = vmul.f32 %v203, %v107
    %v220 = vsel %vm44, %v204, 0.0
    %v221 = vsel %vm45, %v205, 0.0
    %v222 = vsel %vm46, %v206, 0.0
    %v223 = vsel %vm47, %v207, 0.0
    %v224 = vsel %vm48, %v208, 0.0
    %v225 = vsel %vm49, %v209, 0.0
    %v226 = vsel %vm50, %v210, 0.0
    %v227 = vsel %vm51, %v211, 0.0
    %v228 = vsel %vm52, %v212, 0.0
    %v229 = vsel %vm53, %v213, 0.0
    %v230 = vsel %vm54, %v214, 0.0
    %v231 = vsel %vm55, %v215, 0.0
    %v232 = vsel %vm56, %v216, 0.0
    %v233 = vsel %vm57, %v217, 0.0
    %v234 = vsel %vm58, %v218, 0.0
    %v235 = vsel %vm59, %v219, 0.0
    %v236 = vlog2.pop %v76
    %v237 = vmul.f32 %v236, 0.6931472
    %v238 = vlog2.pop %v77
    %v239 = vmul.f32 %v238, 0.6931472
    %v240 = vlog2.pop %v78
    %v241 = vmul.f32 %v240, 0.6931472
    %v242 = vlog2.pop %v79
    %v243 = vmul.f32 %v242, 0.6931472
    %v244 = vlog2.pop %v80
    %v245 = vmul.f32 %v244, 0.6931472
    %v246 = vlog2.pop %v81
    %v247 = vmul.f32 %v246, 0.6931472
    %v248 = vlog2.pop %v82
    %v249 = vmul.f32 %v248, 0.6931472
    %v250 = vlog2.pop %v83
    %v251 = vmul.f32 %v250, 0.6931472
    %v252 = vlog2.pop %v84
    %v253 = vmul.f32 %v252, 0.6931472
    %v254 = vlog2.pop %v85
    %v255 = vmul.f32 %v254, 0.6931472
    %v256 = vlog2.pop %v86
    %v257 = vmul.f32 %v256, 0.6931472
    %v258 = vlog2.pop %v87
    %v259 = vmul.f32 %v258, 0.6931472
    %v260 = vlog2.pop %v88
    %v261 = vmul.f32 %v260, 0.6931472
    %v262 = vlog2.pop %v89
    %v263 = vmul.f32 %v262, 0.6931472
    %v264 = vlog2.pop %v90
    %v265 = vmul.f32 %v264, 0.6931472
    %v266 = vlog2.pop %v91
    %v267 = vmul.f32 %v266, 0.6931472
    %v268 = vmul.f32 %v237, %v108
    %v269 = vmul.f32 %v239, %v109
    %v270 = vmul.f32 %v241, %v110
    %v271 = vmul.f32 %v243, %v111
    %v272 = vmul.f32 %v245, %v112
    %v273 = vmul.f32 %v247, %v113
    %v274 = vmul.f32 %v249, %v114
    %v275 = vmul.f32 %v251, %v115
    %v276 = vmul.f32 %v253, %v116
    %v277 = vmul.f32 %v255, %v117
    %v278 = vmul.f32 %v257, %v118
    %v279 = vmul.f32 %v259, %v119
    %v280 = vmul.f32 %v261, %v120
    %v281 = vmul.f32 %v263, %v121
    %v282 = vmul.f32 %v265, %v122
    %v283 = vmul.f32 %v267, %v123
    %v284 = vmul.f32 %v268, %v156
    %v285 = vmul.f32 %v269, %v157
    %v286 = vmul.f32 %v270, %v158
    %v287 = vmul.f32 %v271, %v159
    %v288 = vmul.f32 %v272, %v160
    %v289 = vmul.f32 %v273, %v161
    %v290 = vmul.f32 %v274, %v162
    %v291 = vmul.f32 %v275, %v163
    %v292 = vmul.f32 %v276, %v164
    %v293 = vmul.f32 %v277, %v165
    %v294 = vmul.f32 %v278, %v166
    %v295 = vmul.f32 %v279, %v167
    %v296 = vmul.f32 %v280, %v168
    %v297 = vmul.f32 %v281, %v169
    %v298 = vmul.f32 %v282, %v170
    %v299 = vmul.f32 %v283, %v171
    %v300 = vsel %vm60, %v284, 0.0
    %v301 = vsel %vm61, %v285, 0.0
    %v302 = vsel %vm62, %v286, 0.0
    %v303 = vsel %vm63, %v287, 0.0
    %v304 = vsel %vm64, %v288, 0.0
    %v305 = vsel %vm65, %v289, 0.0
    %v306 = vsel %vm66, %v290, 0.0
    %v307 = vsel %vm67, %v291, 0.0
    %v308 = vsel %vm68, %v292, 0.0
    %v309 = vsel %vm69, %v293, 0.0
    %v310 = vsel %vm70, %v294, 0.0
    %v311 = vsel %vm71, %v295, 0.0
    %v312 = vsel %vm72, %v296, 0.0
    %v313 = vsel %vm73, %v297, 0.0
    %v314 = vsel %vm74, %v298, 0.0
    %v315 = vsel %vm75, %v299, 0.0
    %vm316 = vcmask 130048
    %v317 = vsel %vm316, %v220, 0.0
    %v318 = vsel %vm316, %v221, 0.0
    %v319 = vadd.f32 %v317, %v318
    %v320 = vsel %vm316, %v222, 0.0
    %v321 = vadd.f32 %v319, %v320
    %v322 = vsel %vm316, %v223, 0.0
    %v323 = vadd.f32 %v321, %v322
    %v324 = vsel %vm316, %v224, 0.0
    %v325 = vadd.f32 %v323, %v324
    %v326 = vsel %vm316, %v225, 0.0
    %v327 = vadd.f32 %v325, %v326
    %v328 = vsel %vm316, %v226, 0.0
    %v329 = vadd.f32 %v327, %v328
    %v330 = vsel %vm316, %v227, 0.0
    %v331 = vadd.f32 %v329, %v330
    %v332 = vsel %vm316, %v228, 0.0
    %v333 = vadd.f32 %v331, %v332
    %v334 = vsel %vm316, %v229, 0.0
    %v335 = vadd.f32 %v333, %v334
    %v336 = vsel %vm316, %v230, 0.0
    %v337 = vadd.f32 %v335, %v336
    %v338 = vsel %vm316, %v231, 0.0
    %v339 = vadd.f32 %v337, %v338
    %v340 = vsel %vm316, %v232, 0.0
    %v341 = vadd.f32 %v339, %v340
    %v342 = vsel %vm316, %v233, 0.0
    %v343 = vadd.f32 %v341, %v342
    %v344 = vsel %vm316, %v234, 0.0
    %v345 = vadd.f32 %v343, %v344
    %v346 = vsel %vm316, %v235, 0.0
    %v347 = vadd.f32 %v345, %v346
    %348 = vadd.xlane.f32.xlu0 %v347
    %v349 = vpop.xlane.xlu0 %348
    %v350 = vrot.slane %v349, 4
    %v351 = vadd.f32 %v349, %v350
    %v352 = vrot.slane %v351, 2
    %v353 = vadd.f32 %v351, %v352
    %v354 = vrot.slane %v353, 1
    %v355 = vadd.f32 %v353, %v354
    %s356 = vtos %v355
    %s357 = scalar_lea.smem [#allocation2], 0
    %358 = sst [smem:[%s357]] %s356
    %v359 = vsel %vm316, %v300, 0.0
    %v360 = vsel %vm316, %v301, 0.0
    %v361 = vadd.f32 %v359, %v360
    %v362 = vsel %vm316, %v302, 0.0
    %v363 = vadd.f32 %v361, %v362
    %v364 = vsel %vm316, %v303, 0.0
    %v365 = vadd.f32 %v363, %v364
    %v366 = vsel %vm316, %v304, 0.0
    %v367 = vadd.f32 %v365, %v366
    %v368 = vsel %vm316, %v305, 0.0
    %v369 = vadd.f32 %v367, %v368
    %v370 = vsel %vm316, %v306, 0.0
    %v371 = vadd.f32 %v369, %v370
    %v372 = vsel %vm316, %v307, 0.0
    %v373 = vadd.f32 %v371, %v372
    %v374 = vsel %vm316, %v308, 0.0
    %v375 = vadd.f32 %v373, %v374
    %v376 = vsel %vm316, %v309, 0.0
    %v377 = vadd.f32 %v375, %v376
    %v378 = vsel %vm316, %v310, 0.0
    %v379 = vadd.f32 %v377, %v378
    %v380 = vsel %vm316, %v311, 0.0
    %v381 = vadd.f32 %v379, %v380
    %v382 = vsel %vm316, %v312, 0.0
    %v383 = vadd.f32 %v381, %v382
    %v384 = vsel %vm316, %v313, 0.0
    %v385 = vadd.f32 %v383, %v384
    %v386 = vsel %vm316, %v314, 0.0
    %v387 = vadd.f32 %v385, %v386
    %v388 = vsel %vm316, %v315, 0.0
    %v389 = vadd.f32 %v387, %v388
    %390 = vadd.xlane.f32.xlu0 %v389
    %v391 = vpop.xlane.xlu0 %390
    %v392 = vrot.slane %v391, 4
    %v393 = vadd.f32 %v391, %v392
    %v394 = vrot.slane %v393, 2
    %v395 = vadd.f32 %v393, %v394
    %v396 = vrot.slane %v395, 1
    %v397 = vadd.f32 %v395, %v396
    %s398 = vtos %v397
    %s399 = scalar_lea.smem [#allocation2], 1
    %400 = sst [smem:[%s399]] %s398
    %v401 = vsel %vm44, 1, 0
    %v402 = vsel %vm45, 1, 0
    %v403 = vsel %vm46, 1, 0
    %v404 = vsel %vm47, 1, 0
    %v405 = vsel %vm48, 1, 0
    %v406 = vsel %vm49, 1, 0
    %v407 = vsel %vm50, 1, 0
    %v408 = vsel %vm51, 1, 0
    %v409 = vsel %vm52, 1, 0
    %v410 = vsel %vm53, 1, 0
    %v411 = vsel %vm54, 1, 0
    %v412 = vsel %vm55, 1, 0
    %v413 = vsel %vm56, 1, 0
    %v414 = vsel %vm57, 1, 0
    %v415 = vsel %vm58, 1, 0
    %v416 = vsel %vm59, 1, 0
    %v417 = vcvt.s32.f32 %v401
    %v418 = vcvt.s32.f32 %v402
    %v419 = vcvt.s32.f32 %v403
    %v420 = vcvt.s32.f32 %v404
    %v421 = vcvt.s32.f32 %v405
    %v422 = vcvt.s32.f32 %v406
    %v423 = vcvt.s32.f32 %v407
    %v424 = vcvt.s32.f32 %v408
    %v425 = vcvt.s32.f32 %v409
    %v426 = vcvt.s32.f32 %v410
    %v427 = vcvt.s32.f32 %v411
    %v428 = vcvt.s32.f32 %v412
    %v429 = vcvt.s32.f32 %v413
    %v430 = vcvt.s32.f32 %v414
    %v431 = vcvt.s32.f32 %v415
    %v432 = vcvt.s32.f32 %v416
    %v433 = vsel %vm316, %v417, 0.0
    %v434 = vsel %vm316, %v418, 0.0
    %v435 = vadd.f32 %v433, %v434
    %v436 = vsel %vm316, %v419, 0.0
    %v437 = vadd.f32 %v435, %v436
    %v438 = vsel %vm316, %v420, 0.0
    %v439 = vadd.f32 %v437, %v438
    %v440 = vsel %vm316, %v421, 0.0
    %v441 = vadd.f32 %v439, %v440
    %v442 = vsel %vm316, %v422, 0.0
    %v443 = vadd.f32 %v441, %v442
    %v444 = vsel %vm316, %v423, 0.0
    %v445 = vadd.f32 %v443, %v444
    %v446 = vsel %vm316, %v424, 0.0
    %v447 = vadd.f32 %v445, %v446
    %v448 = vsel %vm316, %v425, 0.0
    %v449 = vadd.f32 %v447, %v448
    %v450 = vsel %vm316, %v426, 0.0
    %v451 = vadd.f32 %v449, %v450
    %v452 = vsel %vm316, %v427, 0.0
    %v453 = vadd.f32 %v451, %v452
    %v454 = vsel %vm316, %v428, 0.0
    %v455 = vadd.f32 %v453, %v454
    %v456 = vsel %vm316, %v429, 0.0
    %v457 = vadd.f32 %v455, %v456
    %v458 = vsel %vm316, %v430, 0.0
    %v459 = vadd.f32 %v457, %v458
    %v460 = vsel %vm316, %v431, 0.0
    %v461 = vadd.f32 %v459, %v460
    %v462 = vsel %vm316, %v432, 0.0
    %v463 = vadd.f32 %v461, %v462
    %464 = vadd.xlane.f32.xlu0 %v463
    %v465 = vpop.xlane.xlu0 %464
    %v466 = vrot.slane %v465, 4
    %v467 = vadd.f32 %v465, %v466
    %v468 = vrot.slane %v467, 2
    %v469 = vadd.f32 %v467, %v468
    %v470 = vrot.slane %v469, 1
    %v471 = vadd.f32 %v469, %v470
    %s472 = vtos %v471
    %s473 = scalar_lea.smem [#allocation2], 2
    %474 = sst [smem:[%s473]] %s472
    // Predicated region
    $region10: #{tpu_custom_call.1} parent=1 // pred_check
      _
    $region11: #{tpu_custom_call.1} parent=1 // pred_check_branch
      %476 = sbr.rel (0) target = $region13
    $region12: #{tpu_custom_call.1} parent=1 // pred_region
      %s478 = ssub.s32 16, 16
      %479 = vsyncadd [#allocation3], %s478
      %482 = dma.smem_to_hbm [#allocation2], 16, %s2, [#allocation3]
    $region13: #{tpu_custom_call.1} parent=1 // pred_fallthru
      _
    // Predicated region
    $region14: #{tpu_custom_call.1} parent=1 // pred_check
      _
    $region15: #{tpu_custom_call.1} parent=1 // pred_check_branch
      %484 = sbr.rel (0) target = $region17
    $region16: #{tpu_custom_call.1} parent=1 // pred_region
      %485 = dma.done [#allocation3], 16
    $region17: #{tpu_custom_call.1} parent=1 // pred_fallthru
      _
    %486 = sfence
    %487 = vsyncpa [#allocation3], 1

</llo_original>
